<compile_context>
chip_gen: v6e
topology: v6e:2x2x1
jax: 0.10.0
libtpu: 0.0.40
codegen_flags: <defaults>
</compile_context>

<pallas_src>
import functools

import jax
import jax.numpy as jnp
from jax.experimental import pallas as pl
from jax.experimental.pallas import tpu as pltpu


def _round_up(x, m):
    return (x + m - 1) // m * m


def _vmem_budget_bytes():
    """Per-generation VMEM budget: ~100 MiB on v5e/v6e (128 MiB physical),
    ~56 MiB on v7x (64 MiB physical per TensorCore). Conservative fallback."""
    cap = None
    try:
        cap = int(getattr(pltpu.get_tpu_info(), "vmem_capacity_bytes", 0)) or None
    except Exception:
        cap = None
    if cap is None:
        try:
            kind = jax.devices()[0].device_kind.lower()
            cap = (64 << 20) if "v7" in kind else (128 << 20)
        except Exception:
            cap = 64 << 20
    return (56 << 20) if cap <= (64 << 20) else (100 << 20)


def _patchify_kernel(rows_ref, w_ref, pos_ref, o_ref):
    # rows_ref: (bb, tm, P_pad) bf16 -- row 0 of each image is all-zero (cls slot)
    # w_ref:    (P_pad, E)      bf16 -- grid-invariant (same block every step)
    # pos_ref:  (tm, E)         f32  -- bias folded in; row 0 holds cls + pos[0]
    # o_ref:    (bb, tm, E)
    bb, tm, p_pad = rows_ref.shape
    e = w_ref.shape[1]
    # One merged large-M matmul over all bb*tm rows (tm % 16 == 0 keeps the
    # (bb, tm) -> (bb*tm) merge a free bf16 relayout).
    rows = rows_ref[...].reshape(bb * tm, p_pad)
    proj = jnp.dot(rows, w_ref[...], preferred_element_type=jnp.float32)
    out = proj.reshape(bb, tm, e) + pos_ref[...][None, :, :]
    o_ref[...] = out.astype(o_ref.dtype)
    # TODO(synk): dropout is identity here (eval mode); training-mode dropout
    # would use pltpu.prng_seed / pltpu.prng_random_bits.


@functools.partial(jax.jit, static_argnames=("patch_size",))
def patchify_forward(x, w, bias, class_token, pos_emb, *, patch_size):
    """x: (B, C, H, W) -> (B, num_patches + 1, emb_dim)."""
    B, C, H, W = x.shape
    p = patch_size
    hh, ww = H // p, W // p
    N = hh * ww
    P = p * p * C
    E = w.shape[1]
    Np1 = N + 1
    P_pad = _round_up(P, 128)

    # ---- row tiling per image (16-aligned for the bf16 sublane pack) -------
    Np1_16 = _round_up(Np1, 16)
    if Np1_16 <= 512:
        tm, T = Np1_16, 1
    else:
        nT = pl.cdiv(Np1_16, 512)
        tm = _round_up(pl.cdiv(Np1_16, nT), 16)   # balanced tiles, no ragged tail
        T = pl.cdiv(Np1_16, tm)
    Np1_pad = tm * T

    # ---- wrapper-side data movement (bf16 halves rearrange HBM traffic) ----
    # rearrange 'b c (h p1) (w p2) -> b (h w) (p1 p2 c)'
    # TODO(synk): verify in HLO that cast->transpose->pad fuses into one pass;
    # accept NHWC upstream if the transpose materializes an extra copy.
    xb = x.astype(jnp.bfloat16)
    patches = xb.reshape(B, C, hh, p, ww, p)
    patches = jnp.transpose(patches, (0, 2, 4, 3, 5, 1))        # (B,hh,ww,p1,p2,C)
    patches = patches.reshape(B, N, P)
    # One pad: prepend the zero "cls" row, pad rows to Np1_pad, lanes to P_pad.
    rows = jnp.pad(patches, ((0, 0), (1, Np1_pad - Np1), (0, P_pad - P)))

    # MXU-friendly bf16 weight; bias folded into the positional table.
    w_p = jnp.pad(w, ((0, P_pad - P), (0, 0))).astype(jnp.bfloat16)   # (P_pad, E)
    bias_f = bias.reshape(1, E).astype(jnp.float32)
    pos_f = pos_emb.astype(jnp.float32)                                # (Np1, E)
    row0 = class_token.reshape(1, E).astype(jnp.float32) + pos_f[0:1]  # cls+pos[0]
    pos_adj = jnp.concatenate([row0, pos_f[1:] + bias_f], axis=0)      # (Np1, E)
    pos_adj = jnp.pad(pos_adj, ((0, Np1_pad - Np1), (0, 0)))           # (Np1_pad,E)

    # ---- batch tiling + generation-aware VMEM budget ------------------------
    out_dtype = x.dtype
    out_isz = jnp.dtype(out_dtype).itemsize
    budget = _vmem_budget_bytes()
    target_rows = 2048 if budget >= (96 << 20) else 512

    def vmem_need(bb_):
        blk_in = bb_ * tm * P_pad * 2            # bf16 rows block
        blk_out = bb_ * tm * E * out_isz
        blk_pos = tm * E * 4
        weight = P_pad * E * 2                   # double-buffered by default
        temps = 2 * bb_ * tm * E * 4             # f32 proj + pre-cast sum
        return 2 * (blk_in + blk_out + blk_pos + weight) + temps

    bb = max(1, min(B, target_rows // tm))
    while bb > 1 and vmem_need(bb) > budget - (4 << 20):
        bb -= 1
    GB = pl.cdiv(B, bb)                          # partial last batch block is OK
    while GB * T < 2 and bb > 1:                 # keep both v7x TensorCores busy
        bb = max(1, bb // 2)
        GB = pl.cdiv(B, bb)

    vmem_limit = int(min(budget, max(vmem_need(bb) + (8 << 20), 32 << 20)))

    cost = pl.CostEstimate(
        flops=2 * B * Np1_pad * P_pad * E,
        transcendentals=0,
        bytes_accessed=(B * Np1_pad * P_pad * 2     # patch rows (bf16)
                        + P_pad * E * 2             # weight (bf16)
                        + Np1_pad * E * 4           # pos table (f32)
                        + B * Np1 * E * out_isz),   # output
    )

    out = pl.pallas_call(
        _patchify_kernel,
        out_shape=jax.ShapeDtypeStruct((B, Np1, E), out_dtype),
        grid=(GB, T),
        in_specs=[
            pl.BlockSpec((bb, tm, P_pad), lambda i, j: (i, j, 0)),
            pl.BlockSpec((P_pad, E), lambda i, j: (0, 0)),
            pl.BlockSpec((tm, E), lambda i, j: (j, 0)),
        ],
        out_specs=pl.BlockSpec((bb, tm, E), lambda i, j: (i, j, 0)),
        compiler_params=pltpu.CompilerParams(
            dimension_semantics=("parallel", "parallel"),
            vmem_limit_bytes=vmem_limit,
        ),
        cost_estimate=cost,
    )(rows, w_p, pos_adj)
    return out


if __name__ == "__main__":
    # Small shapes consistent with the module.
    patch_size = 4
    C = 4
    H = W = 16
    emb_dim = 32
    B = 2
    N = (H // patch_size) * (W // patch_size)      # 16
    P = patch_size * patch_size * C                # 64

    key = jax.random.PRNGKey(0)
    kx, kw, kb, kc, kp = jax.random.split(key, 5)

    x = jax.random.normal(kx, (B, C, H, W), dtype=jnp.float32)
    # nn.Linear(P, emb_dim): weight (emb_dim, P), bias (emb_dim,)
    w_linear = jax.random.normal(kw, (emb_dim, P), dtype=jnp.float32) * 0.02
    bias = jax.random.normal(kb, (emb_dim,), dtype=jnp.float32) * 0.02
    class_token = jax.random.normal(kc, (1, emb_dim), dtype=jnp.float32)
    pos_emb = jax.random.normal(kp, (N + 1, emb_dim), dtype=jnp.float32)

    out = patchify_forward(x, w_linear.T, bias, class_token, pos_emb,
                           patch_size=patch_size)
    out = jax.block_until_ready(out)

    # Pure-JAX f32 reference (module semantics).
    patches_ref = x.reshape(B, C, H // patch_size, patch_size,
                            W // patch_size, patch_size)
    patches_ref = jnp.transpose(patches_ref, (0, 2, 4, 3, 5, 1)).reshape(B, N, P)
    proj_ref = patches_ref @ w_linear.T + bias
    cls_rep = jnp.broadcast_to(class_token[None], (B, 1, emb_dim))
    ref = jnp.concatenate([cls_rep, proj_ref], axis=1) + pos_emb[None]

    assert out.shape == (B, N + 1, emb_dim)
    # bf16 MXU inputs (f32 accumulate) -> loosened tolerance vs f32 reference.
    assert jnp.allclose(out, ref, atol=2e-2, rtol=2e-2), \
        float(jnp.max(jnp.abs(out - ref)))

    print("KERNEL_OK")
</pallas_src>

<mosaic_0001>
module attributes {stable_mosaic.version = 11 : i64} {
  func.func @_patchify_kernel(%arg0: i32, %arg1: i32, %arg2: memref<1x32x128xbf16, #tpu.memory_space<vmem>>, %arg3: memref<128x32xbf16, #tpu.memory_space<vmem>>, %arg4: memref<32x32xf32, #tpu.memory_space<vmem>>, %arg5: memref<1x32x32xf32, #tpu.memory_space<vmem>>) attributes {dimension_semantics = [#tpu.dimension_semantics<parallel>, #tpu.dimension_semantics<parallel>], iteration_bounds = array<i64: 2, 1>, scalar_prefetch = 0 : i64, scratch_operands = 0 : i64, tpu.core_type = #tpu.core_type<tc>, window_params = [{transform_indices = @transform_0, window_bounds = array<i64: 1, 32, 128>}, {pipeline_mode = #tpu.pipeline_mode<synchronous>, transform_indices = @transform_1, window_bounds = array<i64: 128, 32>}, {transform_indices = @transform_2, window_bounds = array<i64: 32, 32>}, {transform_indices = @transform_3, window_bounds = array<i64: 1, 32, 32>}]} {
    %c0 = arith.constant 0 : index
    %c0_0 = arith.constant 0 : index
    %c0_1 = arith.constant 0 : index
    %0 = vector.load %arg2[%c0, %c0_0, %c0_1] : memref<1x32x128xbf16, #tpu.memory_space<vmem>>, vector<1x32x128xbf16>
    %1 = vector.shape_cast %0 : vector<1x32x128xbf16> to vector<32x128xbf16>
    %c0_2 = arith.constant 0 : index
    %c0_3 = arith.constant 0 : index
    %2 = vector.load %arg3[%c0_2, %c0_3] : memref<128x32xbf16, #tpu.memory_space<vmem>>, vector<128x32xbf16>
    %cst = arith.constant dense<0.000000e+00> : vector<32x32xf32>
    %3 = tpu.matmul %1, %2, %cst {dimension_numbers = #tpu.dot_dimension_numbers<[1], [0], [0], [1], [0, 0, 1, 1], [], []>} : vector<32x128xbf16>, vector<128x32xbf16>, vector<32x32xf32> -> vector<32x32xf32>
    %4 = vector.shape_cast %3 : vector<32x32xf32> to vector<1x32x32xf32>
    %c0_4 = arith.constant 0 : index
    %c0_5 = arith.constant 0 : index
    %5 = vector.load %arg4[%c0_4, %c0_5] : memref<32x32xf32, #tpu.memory_space<vmem>>, vector<32x32xf32>
    %6 = vector.shape_cast %5 : vector<32x32xf32> to vector<1x32x32xf32>
    %7 = arith.addf %4, %6 : vector<1x32x32xf32>
    %c0_6 = arith.constant 0 : index
    %c0_7 = arith.constant 0 : index
    %c0_8 = arith.constant 0 : index
    %8 = vector.load %arg5[%c0_6, %c0_7, %c0_8] : memref<1x32x32xf32, #tpu.memory_space<vmem>>, vector<1x32x32xf32>
    tpu.vector_store %arg5[%c0_6, %c0_7, %c0_8], %7 {strides = array<i32>} : memref<1x32x32xf32, #tpu.memory_space<vmem>>, vector<1x32x32xf32>,
    return
  }
  func.func @transform_0(%arg0: i32, %arg1: i32) -> (i32, i32, i32) {
    %c0_i32 = arith.constant 0 : i32
    %c0_i32_0 = arith.constant 0 : i32
    return %arg0, %arg1, %c0_i32 : i32, i32, i32
  }
  func.func @transform_1(%arg0: i32, %arg1: i32) -> (i32, i32) {
    %c0_i32 = arith.constant 0 : i32
    %c0_i32_0 = arith.constant 0 : i32
    %c0_i32_1 = arith.constant 0 : i32
    return %c0_i32, %c0_i32_0 : i32, i32
  }
  func.func @transform_2(%arg0: i32, %arg1: i32) -> (i32, i32) {
    %c0_i32 = arith.constant 0 : i32
    %c0_i32_0 = arith.constant 0 : i32
    return %arg1, %c0_i32 : i32, i32
  }
  func.func @transform_3(%arg0: i32, %arg1: i32) -> (i32, i32, i32) {
    %c0_i32 = arith.constant 0 : i32
    %c0_i32_0 = arith.constant 0 : i32
    return %arg0, %arg1, %c0_i32 : i32, i32, i32
  }
}

</mosaic_0001>

<llo_original>
// kernel: patchify_forward.1
$region0: #{patchify_forward.1}
  #allocation0 [shape = 'u32[]', space=smem, size = 0x4, offset = 0x4, fixed_abs, tag = 'smem constant byte address 0x4 - core index']
  #allocation1 [shape = 'u32[144,128]{1,0:T(1,128)}', space=vmem, size = 0x12000, scoped, tag = 'internal scratch']
  %s0 = inlined_call_operand.vmem [shape: bf16[2,32,128], index: 0, kind: input, shape index: {}]
  %s1 = inlined_call_operand.vmem [shape: bf16[128,32], index: 1, kind: input, shape index: {}]
  %s2 = inlined_call_operand.vmem [shape: f32[32,32], index: 2, kind: input, shape index: {}]
  %s3 = inlined_call_operand.vmem [shape: f32[2,17,32], index: 3, kind: output, shape index: {}]
  %s4 = sld [smem:[#allocation0]]
  $region93: #{patchify_forward.1} parent=0
    _
  %s6 = ssub.s32 1, %s4
  %s7 = scalar_select 0, %s6, %s4
  $region1: #{patchify_forward.1} parent=0
    #allocation2 [shape = 'u8[32768]{0}', space=vmem, size = 0x8000, scoped, tag = 'output window, operand 0']
    loop: start=0, step=1, limit=4
    $region2: #{patchify_forward.1} parent=1 // loop_pre_header
      _
    $region3: #{patchify_forward.1} parent=1 // loop_header
      %s9 = sphi 0, %s13
      %p10 = scmp.ge.s32.totalorder %s9, 4
      %s16 = sphi 0, %s28
      %s17 = sphi 0, %s24
      %s18 = sphi 0, %s16
      %s19 = sphi 0, %s17
      %s20 = sphi 0, %s18
      %s21 = sphi 0, %s19
      %s33 = sphi 0, %s35
      %s36 = sphi 0, %s33
      %s37 = sphi 0, %s36
      %s53 = sphi 0, %s37
      %s57 = sphi 0, %s57
      %s59 = sphi 0, %s57
      %s60 = sphi 0, %s59
      %s74 = sphi 0, %s60
      %s80 = sphi 0, %s82
      %s83 = sphi 0, %s80
      %s84 = sphi 0, %s83
      %s100 = sphi 0, %s84
      %s108 = sphi 0, %s110
      %s111 = sphi 0, %s108
      %s112 = sphi 0, %s111
      %s128 = sphi 0, %s112
    $region4: #{patchify_forward.1} parent=1 // loop_header_branch
      %12 = sbr.rel (%p10) target = $region8
    $region5: #{patchify_forward.1} parent=1 // loop_body
      %s14 = ssub.s32 %s9, 1
      %s15 = ssub.s32 %s9, 2
      %s22 = sadd.s32 1, %s17
      %p23 = scmp.ge.s32.totalorder %s22, 1
      %s24 = scalar_select %p23, 0, %s22
      %s25 = sadd.s32 1, %s16
      %s26 = scalar_select %p23, %s25, %s16
      %p27 = scmp.ge.s32.totalorder %s26, 2
      %s28 = scalar_select %p27, 0, %s26
      %s29 = ssub.s32 %s16, %s28
      %s30 = ssub.s32 %s17, %s24
      %s31 = sor.u32 %s29, %s30
      %p32 = scmp.eq.s32.totalorder %s31, 0
      %s34 = sadd.s32 %s33, 1
      %s35 = scalar_select %p32, %s33, %s34
      %p38 = pneg %p32
      %p39 = scmp.eq.s32.totalorder %s9, 1
      %p40 = por %p38, %p39
      %p41 = scmp.ne.s32.totalorder %s33, %s36
      %p42 = scmp.eq.s32.totalorder %s9, 0
      %p43 = por %p41, %p42
      %p44 = scmp.ne.s32.totalorder %s33, %s36
      %p45 = scmp.eq.s32.totalorder %s14, 1
      %p46 = por %p44, %p45
      %p47 = scmp.ne.s32.totalorder %s36, %s37
      %p48 = scmp.eq.s32.totalorder %s14, 0
      %p49 = por %p47, %p48
      %p50 = scmp.ne.s32.totalorder %s36, %s37
      %p51 = scmp.eq.s32.totalorder %s15, 1
      %p52 = por %p50, %p51
      %p54 = scmp.ne.s32.totalorder %s37, %s53
      %p55 = scmp.eq.s32.totalorder %s15, 0
      %p56 = por %p54, %p55
      %s58 = sadd.s32 %s57, 1
      %p61 = scmp.eq.s32.totalorder %s9, 1
      %p62 = scmp.ne.s32.totalorder %s57, %s59
      %p63 = scmp.eq.s32.totalorder %s9, 0
      %p64 = por %p62, %p63
      %p65 = scmp.ne.s32.totalorder %s57, %s59
      %p66 = scmp.eq.s32.totalorder %s14, 1
      %p67 = por %p65, %p66
      %p68 = scmp.ne.s32.totalorder %s59, %s60
      %p69 = scmp.eq.s32.totalorder %s14, 0
      %p70 = por %p68, %p69
      %p71 = scmp.ne.s32.totalorder %s59, %s60
      %p72 = scmp.eq.s32.totalorder %s15, 1
      %p73 = por %p71, %p72
      %p75 = scmp.ne.s32.totalorder %s60, %s74
      %p76 = scmp.eq.s32.totalorder %s15, 0
      %p77 = por %p75, %p76
      %s78 = ssub.s32 %s17, %s24
      %p79 = scmp.eq.s32.totalorder %s78, 0
      %s81 = sadd.s32 %s80, 1
      %s82 = scalar_select %p79, %s80, %s81
      %p85 = pneg %p79
      %p86 = scmp.eq.s32.totalorder %s9, 1
      %p87 = por %p85, %p86
      %p88 = scmp.ne.s32.totalorder %s80, %s83
      %p89 = scmp.eq.s32.totalorder %s9, 0
      %p90 = por %p88, %p89
      %p91 = scmp.ne.s32.totalorder %s80, %s83
      %p92 = scmp.eq.s32.totalorder %s14, 1
      %p93 = por %p91, %p92
      %p94 = scmp.ne.s32.totalorder %s83, %s84
      %p95 = scmp.eq.s32.totalorder %s14, 0
      %p96 = por %p94, %p95
      %p97 = scmp.ne.s32.totalorder %s83, %s84
      %p98 = scmp.eq.s32.totalorder %s15, 1
      %p99 = por %p97, %p98
      %p101 = scmp.ne.s32.totalorder %s84, %s100
      %p102 = scmp.eq.s32.totalorder %s15, 0
      %p103 = por %p101, %p102
      %s104 = ssub.s32 %s16, %s28
      %s105 = ssub.s32 %s17, %s24
      %s106 = sor.u32 %s104, %s105
      %p107 = scmp.eq.s32.totalorder %s106, 0
      %s109 = sadd.s32 %s108, 1
      %s110 = scalar_select %p107, %s108, %s109
      %p113 = pneg %p107
      %p114 = scmp.eq.s32.totalorder %s9, 1
      %p115 = por %p113, %p114
      %p116 = scmp.ne.s32.totalorder %s108, %s111
      %p117 = scmp.eq.s32.totalorder %s9, 0
      %p118 = por %p116, %p117
      %p119 = scmp.ne.s32.totalorder %s108, %s111
      %p120 = scmp.eq.s32.totalorder %s14, 1
      %p121 = por %p119, %p120
      %p122 = scmp.ne.s32.totalorder %s111, %s112
      %p123 = scmp.eq.s32.totalorder %s14, 0
      %p124 = por %p122, %p123
      %p125 = scmp.ne.s32.totalorder %s111, %s112
      %p126 = scmp.eq.s32.totalorder %s15, 1
      %p127 = por %p125, %p126
      %p129 = scmp.ne.s32.totalorder %s112, %s128
      %p130 = scmp.eq.s32.totalorder %s15, 0
      %p131 = por %p129, %p130
      %p132 = scmp.le.s32.totalorder 1, %s9
      %p133 = scmp.lt.s32.totalorder %s9, 3
      %p134 = pnand %p132, %p133
      %p135 = pneg %p134
      // Predicated region
      $region9: #{patchify_forward.1} parent=5 // pred_check
        _
      $region10: #{patchify_forward.1} parent=5 // pred_check_branch
        %137 = sbr.rel (%p134) target = $region12
      $region11: #{patchify_forward.1} parent=5 // pred_region
        %s138 = ssub.s32 %s9, 1
        // Predicated region
        $region13: #{patchify_forward.1} parent=11 // pred_check
          %p139 = pneg %p70
        $region14: #{patchify_forward.1} parent=11 // pred_check_branch
          %141 = sbr.rel (%p139) target = $region16
        $region15: #{patchify_forward.1} parent=11 // pred_region
          _
        $region16: #{patchify_forward.1} parent=11 // pred_fallthru
          _
        // Predicated region
        $region17: #{patchify_forward.1} parent=11 // pred_check
          %p142 = pneg %p96
        $region18: #{patchify_forward.1} parent=11 // pred_check_branch
          %144 = sbr.rel (%p142) target = $region20
        $region19: #{patchify_forward.1} parent=11 // pred_region
          %s145 = smul.u32 4, %s19
          %p146 = scmp.lt.s32.totalorder %s145, 3
          %s147 = scalar_select %p146, %s145, 3
          %s148 = smul.addr %s147, 8
          %s149 = scalar_lea.vmem %s2, %s148
          %s150 = smul.u32 4, %s19
        $region20: #{patchify_forward.1} parent=11 // pred_fallthru
          _
      $region12: #{patchify_forward.1} parent=5 // pred_fallthru
        _
      %p151 = scmp.lt.s32.totalorder %s9, 2
      // Predicated region
      $region21: #{patchify_forward.1} parent=5 // pred_check
        %p152 = pneg %p151
      $region22: #{patchify_forward.1} parent=5 // pred_check_branch
        %154 = sbr.rel (%p152) target = $region24
      $region23: #{patchify_forward.1} parent=5 // pred_region
        // Predicated region
        $region25: #{patchify_forward.1} parent=23 // pred_check
          %p155 = pneg %p43
        $region26: #{patchify_forward.1} parent=23 // pred_check_branch
          %157 = sbr.rel (%p155) target = $region28
        $region27: #{patchify_forward.1} parent=23 // pred_region
          %s158 = smul.u32 4, %s17
          %p159 = scmp.lt.s32.totalorder %s16, 1
          %s160 = scalar_select %p159, %s16, 1
          %p161 = scmp.lt.s32.totalorder %s158, 3
          %s162 = scalar_select %p161, %s158, 3
          %s163 = smul.addr %s160, 4
          %s164 = sadd.s32 %s162, %s163
          %s165 = smul.addr %s164, 4
          %s166 = scalar_lea.vmem %s0, %s165
          %s167 = smul.u32 4, %s17
        $region28: #{patchify_forward.1} parent=23 // pred_fallthru
          _
      $region24: #{patchify_forward.1} parent=5 // pred_fallthru
        _
      %p168 = scmp.le.s32.totalorder 1, %s9
      %p169 = scmp.lt.s32.totalorder %s9, 3
      %p170 = pnand %p168, %p169
      %p171 = pneg %p170
      // Predicated region
      $region29: #{patchify_forward.1} parent=5 // pred_check
        _
      $region30: #{patchify_forward.1} parent=5 // pred_check_branch
        %173 = sbr.rel (%p170) target = $region32
      $region31: #{patchify_forward.1} parent=5 // pred_region
        %s174 = ssub.s32 %s9, 1
        %s175 = smul.u32 4, %s19
        %p176 = scmp.lt.s32.totalorder %s18, 1
        %s177 = scalar_select %p176, %s18, 1
        %p178 = scmp.lt.s32.totalorder %s175, 3
        %s179 = scalar_select %p178, %s175, 3
        %s180 = smul.addr %s177, 4
        %s181 = sadd.s32 %s179, %s180
        %s182 = smul.addr %s181, 4
        %s183 = scalar_lea.vmem %s0, %s182
        %p184 = pneg %p49
        %p185 = pneg %p46
        %p186 = pneg %p70
        %p187 = pneg %p67
        %s188 = smul.u32 4, %s19
        %p189 = scmp.lt.s32.totalorder %s188, 3
        %s190 = scalar_select %p189, %s188, 3
        %s191 = smul.addr %s190, 8
        %s192 = scalar_lea.vmem %s2, %s191
        %p193 = pneg %p96
        %p194 = pneg %p93
        %p195 = pneg %p124
        %p196 = pneg %p121
        %s197 = sand.u32 %s111, 1
        %s198 = sand.u32 %s111, 1
        %s199 = smul.addr %s198, 32
        %s200 = scalar_lea.vmem [#allocation2], %s199
        %s201 = smul.u32 4, %s19
        %p202 = scmp.lt.s32.totalorder %s18, 1
        %s203 = scalar_select %p202, %s18, 1
        %p204 = scmp.lt.s32.totalorder %s201, 3
        %s205 = scalar_select %p204, %s201, 3
        %s206 = smul.addr %s203, 4
        %s207 = sadd.s32 %s205, %s206
        %s208 = smul.addr %s207, 4
        %s209 = scalar_lea.vmem %s0, %s208
        %s210 = smul.u32 4, %s19
        %s211 = smul.u32 4, %s19
        %p212 = scmp.lt.s32.totalorder %s211, 3
        %s213 = scalar_select %p212, %s211, 3
        %s214 = smul.addr %s213, 8
        %s215 = scalar_lea.vmem %s2, %s214
        %s216 = smul.u32 4, %s19
        %s217 = smul.u32 4, %s19
        %s218 = ssub.s32 3, %s217
        %s219 = smul.u32 128, %s218
        %v221 = vld [vmem:[%s209] sm:$0xf]
        %v222 = vld [vmem:[%s209 + $0x4] sm:$0xf]
        %v223 = vld [vmem:[%s209 + $0x8] sm:$0xf]
        %v224 = vld [vmem:[%s209 + $0xc] sm:$0xf]
        %v225 = vld [vmem:[%s1] sm:$0xf]
        %v226 = vld [vmem:[%s1 + $0x4] sm:$0xf]
        %v227 = vld [vmem:[%s1 + $0x8] sm:$0xf]
        %v228 = vld [vmem:[%s1 + $0xc] sm:$0xf]
        %v229 = vld [vmem:[%s1 + $0x10] sm:$0xf]
        %v230 = vld [vmem:[%s1 + $0x14] sm:$0xf]
        %v231 = vld [vmem:[%s1 + $0x18] sm:$0xf]
        %v232 = vld [vmem:[%s1 + $0x1c] sm:$0xf]
        %v233 = vld [vmem:[%s1 + $0x20] sm:$0xf]
        %v234 = vld [vmem:[%s1 + $0x24] sm:$0xf]
        %v235 = vld [vmem:[%s1 + $0x28] sm:$0xf]
        %v236 = vld [vmem:[%s1 + $0x2c] sm:$0xf]
        %v237 = vld [vmem:[%s1 + $0x30] sm:$0xf]
        %v238 = vld [vmem:[%s1 + $0x34] sm:$0xf]
        %v239 = vld [vmem:[%s1 + $0x38] sm:$0xf]
        %v240 = vld [vmem:[%s1 + $0x3c] sm:$0xf]
        %v245 = vunpack.c.l.b16 %v221
        %v246 = vunpack.c.l.b16 %v222
        %v247 = vunpack.c.l.b16 %v223
        %v248 = vunpack.c.l.b16 %v224
        %v249 = vpack.c.b16 %v246, %v245
        %v250 = vpack.c.b16 %v248, %v247
        %v269 = vunpack.c.l.b16 %v225
        %v270 = vunpack.c.l.b16 %v226
        %v271 = vunpack.c.l.b16 %v227
        %v272 = vunpack.c.l.b16 %v228
        %v273 = vunpack.c.l.b16 %v229
        %v274 = vunpack.c.l.b16 %v230
        %v275 = vunpack.c.l.b16 %v231
        %v276 = vunpack.c.l.b16 %v232
        %v277 = vunpack.c.l.b16 %v233
        %v278 = vunpack.c.l.b16 %v234
        %v279 = vunpack.c.l.b16 %v235
        %v280 = vunpack.c.l.b16 %v236
        %v281 = vunpack.c.l.b16 %v237
        %v282 = vunpack.c.l.b16 %v238
        %v283 = vunpack.c.l.b16 %v239
        %v284 = vunpack.c.l.b16 %v240
        %v285 = vpack.c.b16 %v270, %v269
        %v286 = vpack.c.b16 %v272, %v271
        %v287 = vpack.c.b16 %v274, %v273
        %v288 = vpack.c.b16 %v276, %v275
        %v289 = vpack.c.b16 %v278, %v277
        %v290 = vpack.c.b16 %v280, %v279
        %v291 = vpack.c.b16 %v282, %v281
        %v292 = vpack.c.b16 %v284, %v283
        %301 = vmatprep.subr.bf16.mxu0 0
        %302 = vmatpush1.bf16.msra.mxu0 %v292
        %303 = vmatprep.subr.bf16.mxu0 0
        %304 = vmatpush1.bf16.msra.mxu0 %v291
        %305 = vmatprep.subr.bf16.mxu0 0
        %306 = vmatpush1.bf16.msra.mxu0 %v290
        %307 = vmatprep.subr.bf16.mxu0 0
        %308 = vmatpush1.bf16.msra.mxu0 %v289
        %309 = vmatprep.subr.bf16.mxu0 0
        %310 = vmatpush1.bf16.msra.mxu0 %v288
        %311 = vmatprep.subr.bf16.mxu0 0
        %312 = vmatpush1.bf16.msra.mxu0 %v287
        %313 = vmatprep.subr.bf16.mxu0 0
        %314 = vmatpush1.bf16.msra.mxu0 %v286
        %315 = vmatprep.subr.bf16.mxu0 0
        %316 = vmatpush1.bf16.msra.mxu0 %v285
        %317 = vmatprep.subr.bf16.mxu0 0
        %318 = vmatpush2.bf16.msra.mxu0 0
        %319 = vmatprep.subr.bf16.mxu0 0
        %320 = vmatpush2.bf16.msra.mxu0 0
        %321 = vmatprep.subr.bf16.mxu0 0
        %322 = vmatpush2.bf16.msra.mxu0 0
        %323 = vmatprep.subr.bf16.mxu0 0
        %324 = vmatpush2.bf16.msra.mxu0 0
        %325 = vmatprep.subr.bf16.mxu0 0
        %326 = vmatpush2.bf16.msra.mxu0 0
        %327 = vmatprep.subr.bf16.mxu0 0
        %328 = vmatpush2.bf16.msra.mxu0 0
        %329 = vmatprep.subr.bf16.mxu0 0
        %330 = vmatpush2.bf16.msra.mxu0 0
        %331 = vmatprep.subr.bf16.mxu0 0
        %332 = vmatpush2.bf16.msra.mxu0 0
        %333 = vmatprep.mubr.bf16.mxu0 0
        %334 = vmatmul.mubr.bf16.gmra.mxu0 %v249
        %v335 = vpop.f32.mrf.mxu0
        %v336 = vadd.f32 0.0, %v335
        %v337 = vpop.f32.mrf.mxu0
        %v338 = vpop.f32.mrf.mxu0
        %v339 = vadd.f32 0.0, %v338
        %v340 = vpop.f32.mrf.mxu0
        %341 = vmatprep.mubr.bf16.mxu0 0
        %342 = vmatmul.mubr.bf16.gmra.mxu0 %v250
        %v343 = vpop.f32.mrf.mxu0
        %v344 = vadd.f32 0.0, %v343
        %v345 = vpop.f32.mrf.mxu0
        %v346 = vpop.f32.mrf.mxu0
        %v347 = vadd.f32 0.0, %v346
        %v348 = vpop.f32.mrf.mxu0
        %349 = vdwg.mxu0
        %v350 = vld [vmem:[%s215] sm:$0xff]
        %v351 = vld [vmem:[%s215 + $0x8] sm:$0xff]
        %v352 = vld [vmem:[%s215 + $0x10] sm:$0xff]
        %v353 = vld [vmem:[%s215 + $0x18] sm:$0xff]
        %v354 = vadd.f32 %v336, %v350
        %v355 = vadd.f32 %v339, %v351
        %v356 = vadd.f32 %v344, %v352
        %v357 = vadd.f32 %v347, %v353
        %vm358 = vcmask 261120
        %359 = vst.msk [vmem:[%s200] sm:$0xff] %vm358, %v354
        %360 = vst.msk [vmem:[%s200 + $0x8] sm:$0xff] %vm358, %v355
        %361 = vst.msk [vmem:[%s200 + $0x10] sm:$0xff] %vm358, %v356
        %362 = vst.msk [vmem:[%s200 + $0x18] sm:$0xff] %vm358, %v357
        %s363 = sand.u32 %s111, 1
        %s364 = sand.u32 %s111, 1
        %s365 = smul.addr %s364, 32
        %s366 = scalar_lea.vmem [#allocation2], %s365
        // Predicated region
        $region33: #{patchify_forward.1} parent=31 // pred_check
          %p367 = pneg %p121
        $region34: #{patchify_forward.1} parent=31 // pred_check_branch
          %369 = sbr.rel (%p367) target = $region36
        $region35: #{patchify_forward.1} parent=31 // pred_region
          %s370 = smul.u32 4, %s19
          %s371 = ssub.s32 3, %s370
          %s372 = smul.u32 128, %s371
          %p373 = scmp.ne.s32.totalorder 0, %s372
          %s374 = smul.addr %s18, 3
          %s375 = sadd.s32 %s370, %s374
          %s376 = smul.addr %s375, 8
          %s377 = scalar_lea.vmem %s3, %s376
          // Predicated region
          $region37: #{patchify_forward.1} parent=35 // pred_check
            %p378 = pneg %p373
          $region38: #{patchify_forward.1} parent=35 // pred_check_branch
            %380 = sbr.rel (%p378) target = $region40
          $region39: #{patchify_forward.1} parent=35 // pred_region
            // Predicated region
            $region41: #{patchify_forward.1} parent=39 // pred_check
              _
            $region42: #{patchify_forward.1} parent=39 // pred_check_branch
              %382 = sbr.rel (0) target = $region44
            $region43: #{patchify_forward.1} parent=39 // pred_region
              // Predicated region
              $region63: #{patchify_forward.1} parent=43 // pred_check
                _
              $region64: #{patchify_forward.1} parent=43 // pred_check_branch
                %437 = sbr.rel (0) target = $region66
              $region65: #{patchify_forward.1} parent=43 // pred_region
                %s438 = sdiv.u32.pop %s371, 3
                %s439 = srem.u32.pop %s371, 3
                // While loop
                $region67: #{patchify_forward.1} parent=65 // loop_pre_header
                  _
                $region68: #{patchify_forward.1} parent=65 // loop_header
                  %s441 = sphi 0, %s443
                  %p442 = scmp.ge.s32.totalorder %s441, %s438
                  %s446 = sphi 0, %s457
                  %s447 = sphi %s366, %s460
                  %s448 = sphi %s377, %s461
                $region69: #{patchify_forward.1} parent=65 // loop_header_branch
                  %445 = sbr.rel (%p442) target = $region73
                $region70: #{patchify_forward.1} parent=65 // loop_body
                  %v449 = vld [vmem:[%s447] sm:$0xff]
                  %450 = vst [vmem:[%s448] sm:$0xff] %v449
                  %v451 = vld [vmem:[%s447 + $0x8] sm:$0xff]
                  %452 = vst [vmem:[%s448 + $0x8] sm:$0xff] %v451
                  %v453 = vld [vmem:[%s447 + $0x10] sm:$0xff]
                  %454 = vst [vmem:[%s448 + $0x10] sm:$0xff] %v453
                  %s455 = sadd.s32 1, %s446
                  %p456 = scmp.ge.s32.totalorder %s455, %s438
                  %s457 = scalar_select %p456, 0, %s455
                  %s458 = smul.u32 %s457, 24
                  %s459 = smul.u32 %s457, 24
                  %s460 = scalar_lea.vmem %s366, %s458 [#allocation2]
                  %s461 = scalar_lea.vmem %s377, %s459
                $region71: #{patchify_forward.1} parent=65 // loop_footer
                  %s443 = sadd.s32 %s441, 1
                $region72: #{patchify_forward.1} parent=65 // loop_footer_branch
                  %440 = sbr.rel target = $region68
                $region73: #{patchify_forward.1} parent=65 // loop_exit
                  _
                %s462 = sdiv.u32.pop %s371, 3
                %s463 = srem.u32.pop %s371, 3
                %s464 = smul.u32 %s462, 3
                %s465 = smul.u32 8, %s464
                %s466 = scalar_lea.vmem %s366, %s465 [#allocation2]
                %s467 = smul.u32 8, %s464
                %s468 = scalar_lea.vmem %s377, %s467
                // While loop
                $region74: #{patchify_forward.1} parent=65 // loop_pre_header
                  _
                $region75: #{patchify_forward.1} parent=65 // loop_header
                  %s470 = sphi 0, %s472
                  %p471 = scmp.ge.s32.totalorder %s470, %s463
                  %s475 = sphi 0, %s482
                  %s476 = sphi %s466, %s485
                  %s477 = sphi %s468, %s486
                $region76: #{patchify_forward.1} parent=65 // loop_header_branch
                  %474 = sbr.rel (%p471) target = $region80
                $region77: #{patchify_forward.1} parent=65 // loop_body
                  %v478 = vld [vmem:[%s476] sm:$0xff]
                  %479 = vst [vmem:[%s477] sm:$0xff] %v478
                  %s480 = sadd.s32 1, %s475
                  %p481 = scmp.ge.s32.totalorder %s480, %s463
                  %s482 = scalar_select %p481, 0, %s480
                  %s483 = smul.u32 %s482, 8
                  %s484 = smul.u32 %s482, 8
                  %s485 = scalar_lea.vmem %s466, %s483 [#allocation2]
                  %s486 = scalar_lea.vmem %s468, %s484
                $region78: #{patchify_forward.1} parent=65 // loop_footer
                  %s472 = sadd.s32 %s470, 1
                $region79: #{patchify_forward.1} parent=65 // loop_footer_branch
                  %469 = sbr.rel target = $region75
                $region80: #{patchify_forward.1} parent=65 // loop_exit
                  _
              $region66: #{patchify_forward.1} parent=43 // pred_fallthru
                _
              // Predicated region
              $region81: #{patchify_forward.1} parent=43 // pred_check
                _
              $region82: #{patchify_forward.1} parent=43 // pred_check_branch
                %488 = sbr.rel target = $region84
              $region83: #{patchify_forward.1} parent=43 // pred_region
                _
              $region84: #{patchify_forward.1} parent=43 // pred_fallthru
                _
            $region44: #{patchify_forward.1} parent=39 // pred_fallthru
              _
            // Predicated region
            $region45: #{patchify_forward.1} parent=39 // pred_check
              _
            $region46: #{patchify_forward.1} parent=39 // pred_check_branch
              %384 = sbr.rel target = $region48
            $region47: #{patchify_forward.1} parent=39 // pred_region
              %s386 = ssub.s32 256, 1
              %s387 = sdiv.u32.pop %s371, 3
              %s388 = srem.u32.pop %s371, 3
              // While loop
              $region49: #{patchify_forward.1} parent=47 // loop_pre_header
                _
              $region50: #{patchify_forward.1} parent=47 // loop_header
                %s390 = sphi 0, %s392
                %p391 = scmp.ge.s32.totalorder %s390, %s387
                %s395 = sphi 0, %s406
                %s396 = sphi %s366, %s409
                %s397 = sphi %s377, %s410
              $region51: #{patchify_forward.1} parent=47 // loop_header_branch
                %394 = sbr.rel (%p391) target = $region55
              $region52: #{patchify_forward.1} parent=47 // loop_body
                %v398 = vld [vmem:[%s396] sm:%s386]
                %399 = vst [vmem:[%s397] sm:%s386] %v398
                %v400 = vld [vmem:[%s396 + $0x8] sm:%s386]
                %401 = vst [vmem:[%s397 + $0x8] sm:%s386] %v400
                %v402 = vld [vmem:[%s396 + $0x10] sm:%s386]
                %403 = vst [vmem:[%s397 + $0x10] sm:%s386] %v402
                %s404 = sadd.s32 1, %s395
                %p405 = scmp.ge.s32.totalorder %s404, %s387
                %s406 = scalar_select %p405, 0, %s404
                %s407 = smul.u32 %s406, 24
                %s408 = smul.u32 %s406, 24
                %s409 = scalar_lea.vmem %s366, %s407 [#allocation2]
                %s410 = scalar_lea.vmem %s377, %s408
              $region53: #{patchify_forward.1} parent=47 // loop_footer
                %s392 = sadd.s32 %s390, 1
              $region54: #{patchify_forward.1} parent=47 // loop_footer_branch
                %389 = sbr.rel target = $region50
              $region55: #{patchify_forward.1} parent=47 // loop_exit
                _
              %s411 = sdiv.u32.pop %s371, 3
              %s412 = srem.u32.pop %s371, 3
              %s413 = smul.u32 %s411, 3
              %s414 = smul.u32 8, %s413
              %s415 = scalar_lea.vmem %s366, %s414 [#allocation2]
              %s416 = smul.u32 8, %s413
              %s417 = scalar_lea.vmem %s377, %s416
              // While loop
              $region56: #{patchify_forward.1} parent=47 // loop_pre_header
                _
              $region57: #{patchify_forward.1} parent=47 // loop_header
                %s419 = sphi 0, %s421
                %p420 = scmp.ge.s32.totalorder %s419, %s412
                %s424 = sphi 0, %s431
                %s425 = sphi %s415, %s434
                %s426 = sphi %s417, %s435
              $region58: #{patchify_forward.1} parent=47 // loop_header_branch
                %423 = sbr.rel (%p420) target = $region62
              $region59: #{patchify_forward.1} parent=47 // loop_body
                %v427 = vld [vmem:[%s425] sm:%s386]
                %428 = vst [vmem:[%s426] sm:%s386] %v427
                %s429 = sadd.s32 1, %s424
                %p430 = scmp.ge.s32.totalorder %s429, %s412
                %s431 = scalar_select %p430, 0, %s429
                %s432 = smul.u32 %s431, 8
                %s433 = smul.u32 %s431, 8
                %s434 = scalar_lea.vmem %s415, %s432 [#allocation2]
                %s435 = scalar_lea.vmem %s417, %s433
              $region60: #{patchify_forward.1} parent=47 // loop_footer
                %s421 = sadd.s32 %s419, 1
              $region61: #{patchify_forward.1} parent=47 // loop_footer_branch
                %418 = sbr.rel target = $region57
              $region62: #{patchify_forward.1} parent=47 // loop_exit
                _
            $region48: #{patchify_forward.1} parent=39 // pred_fallthru
              _
          $region40: #{patchify_forward.1} parent=35 // pred_fallthru
            _
          %489 = vnop
        $region36: #{patchify_forward.1} parent=31 // pred_fallthru
          _
      $region32: #{patchify_forward.1} parent=5 // pred_fallthru
        _
      %p490 = scmp.le.s32.totalorder 2, %s9
      // Predicated region
      $region85: #{patchify_forward.1} parent=5 // pred_check
        %p491 = pneg %p490
      $region86: #{patchify_forward.1} parent=5 // pred_check_branch
        %493 = sbr.rel (%p491) target = $region88
      $region87: #{patchify_forward.1} parent=5 // pred_region
        %s494 = ssub.s32 %s9, 2
        // Predicated region
        $region89: #{patchify_forward.1} parent=87 // pred_check
          %p495 = pneg %p127
        $region90: #{patchify_forward.1} parent=87 // pred_check_branch
          %497 = sbr.rel (%p495) target = $region92
        $region91: #{patchify_forward.1} parent=87 // pred_region
          %s498 = sand.u32 %s112, 1
          %s499 = sand.u32 %s112, 1
          %s500 = smul.addr %s499, 32
          %s501 = scalar_lea.vmem [#allocation2], %s500
        $region92: #{patchify_forward.1} parent=87 // pred_fallthru
          _
      $region88: #{patchify_forward.1} parent=5 // pred_fallthru
        _
    $region6: #{patchify_forward.1} parent=1 // loop_footer
      %s13 = sadd.s32 1, %s9
    $region7: #{patchify_forward.1} parent=1 // loop_footer_branch
      %8 = sbr.rel target = $region3
    $region8: #{patchify_forward.1} parent=1 // loop_exit
      _

</llo_original>
